<compile_context>
chip_gen: v7x
topology: tpu7x:2x2x1
jax: 0.10.0
libtpu: 0.0.40
codegen_flags: <defaults>
</compile_context>

<pallas_src>
import functools

import jax
import jax.numpy as jnp
from jax.experimental import pallas as pl
from jax.experimental.pallas import tpu as pltpu

_LANE = 128
_SUBLANE = 8
_TB_DEFAULT = 16384          # batch tile (lanes); ~10-15 MiB VMEM at f32


def _round_up(x, m):
    return ((x + m - 1) // m) * m


def _tpu_flags():
    """Resolve (use_bf16_softplus, multi_tensorcore) from the local TPU kind."""
    try:
        kind = jax.devices()[0].device_kind.lower()
    except Exception:
        return False, False
    if "tpu" not in kind:
        return False, False
    bf16_ok = ("v6" in kind) or ("v7" in kind) or ("7x" in kind)
    # v5e / v6e ("lite") have one TensorCore per chip; v4 / v5p / v7x have two.
    single_core = ("lite" in kind) or ("v5e" in kind) or ("v6e" in kind)
    return bf16_ok, not single_core


def _softplus(z, use_bf16):
    # softplus(z) = max(z, 0) + log1p(exp(-|z|)).  The magnitude-carrying term
    # stays f32; only the bounded transcendental tail optionally runs in bf16
    # (halves the pushes on the binding EUP slot on v6e/v7x, error <= ~3e-3).
    neg_abs = -jnp.abs(z)
    if use_bf16:
        tail = jnp.log1p(jnp.exp(neg_abs.astype(jnp.bfloat16))).astype(jnp.float32)
    else:
        tail = jnp.log1p(jnp.exp(neg_abs))
    return jnp.maximum(z, 0.0) + tail


def barrier_kernel(x_ref, w1_ref, b1_ref, w2_ref, b2_ref, w3_ref, b3_ref,
                   w4_ref, b4_ref, o_ref, *, use_bf16):
    x = x_ref[...]                                          # [Sp, TB] batch on lanes

    # ---- Layer 1 on the MXU (K = Sp is tiny, but the MXU slot is idle and this
    # removes the old materialized-broadcast pressure on VALU / store slots).
    h = jnp.dot(w1_ref[...], x, preferred_element_type=jnp.float32) + b1_ref[...]
    h = _softplus(h, use_bf16)

    # ---- Layers 2 & 3: [H,H] @ [H,TB] on the MXU, f32 accumulation.
    h = jnp.dot(w2_ref[...], h, preferred_element_type=jnp.float32) + b2_ref[...]
    h = _softplus(h, use_bf16)

    h = jnp.dot(w3_ref[...], h, preferred_element_type=jnp.float32) + b3_ref[...]
    h = _softplus(h, use_bf16)

    # ---- Output layer (width 1): VPU multiply + sublane (XLU) reduce.
    # TODO(synk): switch to a [1,H]@[H,TB] MXU dot if a bundle dump shows VALU
    # (not EUP) as the saturating slot after the bf16 change.
    z = jnp.sum(h * w4_ref[...], axis=0, keepdims=True) + b4_ref[...]   # [1, TB]

    # ---- Sigmoid epilogue on the EUP: exp + approx reciprocal (vrcp path).
    o_ref[...] = pl.reciprocal(1.0 + jnp.exp(-z), approx=True).astype(o_ref.dtype)


@functools.partial(jax.jit, static_argnames=("tb_max", "use_bf16", "min_steps"))
def _barrier_nn_impl(state, params, tb_max, use_bf16, min_steps):
    w1, b1, w2, b2, w3, b3, w4, b4 = params
    B, S = state.shape
    H = w1.shape[0]

    # Pad the (tiny) contraction dim to a full sublane group so the layer-1 MXU
    # matmul is trivially well shaped; weight pad happens on a tiny array.
    Sp = _round_up(S, _SUBLANE)
    x = state.T.astype(jnp.float32)                         # [S, B]
    if Sp != S:
        x = jnp.pad(x, ((0, Sp - S), (0, 0)))
        w1 = jnp.pad(w1, ((0, 0), (0, Sp - S)))

    # Batch tile on the lane axis.  No round-up of B to a TB multiple: the last
    # block is partial (padded lanes are lane-isolated garbage that is never
    # written back).  On multi-TC chips cap TB so the grid has >= min_steps.
    tb_max = _round_up(tb_max, _LANE)
    Bl = _round_up(B, _LANE)
    TB = min(tb_max, Bl)
    if min_steps > 1:
        TB = min(TB, max(_LANE, _round_up(pl.cdiv(Bl, min_steps), _LANE)))
    grid = (pl.cdiv(B, TB),)

    const = lambda i: (0, 0)     # weights/biases: resident, never re-DMA'd
    tiled = lambda i: (0, i)     # x / output: tiled over batch (lane axis)

    flops = 2 * B * (Sp * H + 2 * H * H + H)
    transcendentals = B * (6 * H + 1)                       # 2/softplus + sigmoid
    bytes_accessed = 4 * (Sp * B + B + Sp * H + 2 * H * H + 4 * H + 1)

    kernel = functools.partial(barrier_kernel, use_bf16=use_bf16)

    out = pl.pallas_call(
        kernel,
        out_shape=jax.ShapeDtypeStruct((1, B), jnp.float32),
        grid_spec=pltpu.PrefetchScalarGridSpec(
            num_scalar_prefetch=0,
            grid=grid,
            in_specs=[
                pl.BlockSpec((Sp, TB), tiled),     # x
                pl.BlockSpec((H, Sp), const),      # W1 (K padded to Sp)
                pl.BlockSpec((H, 1), const),       # b1
                pl.BlockSpec((H, H), const),       # W2
                pl.BlockSpec((H, 1), const),       # b2
                pl.BlockSpec((H, H), const),       # W3
                pl.BlockSpec((H, 1), const),       # b3
                pl.BlockSpec((H, 1), const),       # W4 (stored as column)
                pl.BlockSpec((1, 1), const),       # b4
            ],
            out_specs=pl.BlockSpec((1, TB), tiled),
        ),
        compiler_params=pltpu.CompilerParams(
            dimension_semantics=("parallel",),     # shard batch tiles across TCs
            vmem_limit_bytes=32 * 1024 * 1024,     # covers TB=16384 f32 on v5e
        ),
        cost_estimate=pl.CostEstimate(
            flops=flops,
            transcendentals=transcendentals,
            bytes_accessed=bytes_accessed,
        ),
    )(x, w1, b1, w2, b2, w3, b3, w4, b4)

    return out.T                                            # [B, 1]


def barrier_nn(state, params, *, tb_max=_TB_DEFAULT, use_bf16=None, min_steps=None):
    """state: [B, state_size] f32 -> [B, 1] f32 (sigmoid barrier values)."""
    auto_bf16, multi_core = _tpu_flags()
    if use_bf16 is None:
        use_bf16 = auto_bf16
    if min_steps is None:
        min_steps = 2 if multi_core else 1
    return _barrier_nn_impl(state, params, tb_max=int(tb_max),
                            use_bf16=bool(use_bf16), min_steps=int(min_steps))


def init_params(key, state_size, hidden_size):
    """Deterministic init mirroring the PyTorch module's shapes.

    Weights in PyTorch [out_features, in_features] layout (kernel computes W @ x
    on the transposed problem); biases as [out, 1]. Kaiming-normal (fan_in) for
    the first three Linear weights, small uniform for the last layer and biases."""
    ks = jax.random.split(key, 8)

    def kaiming(k, fan_out, fan_in):
        std = jnp.sqrt(2.0 / fan_in)
        return jax.random.normal(k, (fan_out, fan_in), jnp.float32) * std

    def uniform(k, shape, fan_in):
        bound = 1.0 / jnp.sqrt(fan_in)
        return jax.random.uniform(k, shape, jnp.float32, -bound, bound)

    H, S = hidden_size, state_size
    w1 = kaiming(ks[0], H, S)
    b1 = uniform(ks[1], (H, 1), S)
    w2 = kaiming(ks[2], H, H)
    b2 = uniform(ks[3], (H, 1), H)
    w3 = kaiming(ks[4], H, H)
    b3 = uniform(ks[5], (H, 1), H)
    w4 = uniform(ks[6], (H, 1), H)     # final layer weight as a column
    b4 = uniform(ks[7], (1, 1), H)
    return (w1, b1, w2, b2, w3, b3, w4, b4)


def reference(state, params):
    """Pure-JAX reference in the original [B, features] convention."""
    w1, b1, w2, b2, w3, b3, w4, b4 = params
    h = jax.nn.softplus(state @ w1.T + b1.T)
    h = jax.nn.softplus(h @ w2.T + b2.T)
    h = jax.nn.softplus(h @ w3.T + b3.T)
    return jax.nn.sigmoid(h @ w4 + b4)


if __name__ == "__main__":
    state_size, hidden_size = 4, 32

    key = jax.random.PRNGKey(0)
    k_small, k_big, k_p = jax.random.split(key, 3)
    params = init_params(k_p, state_size, hidden_size)

    use_bf16_auto, _ = _tpu_flags()
    tol_auto = 1e-2 if use_bf16_auto else 2e-3

    # 1) Small batch, device-default precision: one partial lane tile.
    state_small = jax.random.normal(k_small, (8, state_size), jnp.float32)
    out_small = jax.block_until_ready(barrier_nn(state_small, params))
    ref_small = reference(state_small, params)
    assert out_small.shape == (8, 1), out_small.shape
    assert jnp.allclose(out_small, ref_small, atol=tol_auto, rtol=tol_auto)

    # 2) Ragged batch with a tiny tile: 3 grid steps, partial last block
    #    (exercises the no-overpadding path).
    state_big = jax.random.normal(k_big, (300, state_size), jnp.float32)
    out_big = jax.block_until_ready(barrier_nn(state_big, params, tb_max=128))
    ref_big = reference(state_big, params)
    assert out_big.shape == (300, 1), out_big.shape
    assert jnp.allclose(out_big, ref_big, atol=tol_auto, rtol=tol_auto)

    # 3) Same batch, default tile selection, forced f32 softplus: tight-tolerance
    #    check of the auto TB / multi-core step-count path.
    out_f32 = jax.block_until_ready(barrier_nn(state_big, params, use_bf16=False))
    assert out_f32.shape == (300, 1), out_f32.shape
    assert jnp.allclose(out_f32, ref_big, atol=2e-3, rtol=2e-3)

    print("KERNEL_OK")
</pallas_src>

<mosaic_0001>
module attributes {stable_mosaic.version = 11 : i64} {
  func.func @barrier_kernel(%arg0: i32, %arg1: memref<8x128xf32, #tpu.memory_space<vmem>>, %arg2: memref<32x8xf32, #tpu.memory_space<vmem>>, %arg3: memref<32x1xf32, #tpu.memory_space<vmem>>, %arg4: memref<32x32xf32, #tpu.memory_space<vmem>>, %arg5: memref<32x1xf32, #tpu.memory_space<vmem>>, %arg6: memref<32x32xf32, #tpu.memory_space<vmem>>, %arg7: memref<32x1xf32, #tpu.memory_space<vmem>>, %arg8: memref<32x1xf32, #tpu.memory_space<vmem>>, %arg9: memref<1x1xf32, #tpu.memory_space<vmem>>, %arg10: memref<1x128xf32, #tpu.memory_space<vmem>>) attributes {dimension_semantics = [#tpu.dimension_semantics<parallel>], iteration_bounds = array<i64: 1>, scalar_prefetch = 0 : i64, scratch_operands = 0 : i64, tpu.core_type = #tpu.core_type<tc>, window_params = [{transform_indices = @transform_0, window_bounds = array<i64: 8, 128>}, {pipeline_mode = #tpu.pipeline_mode<synchronous>, transform_indices = @transform_1, window_bounds = array<i64: 32, 8>}, {pipeline_mode = #tpu.pipeline_mode<synchronous>, transform_indices = @transform_2, window_bounds = array<i64: 32, 1>}, {pipeline_mode = #tpu.pipeline_mode<synchronous>, transform_indices = @transform_3, window_bounds = array<i64: 32, 32>}, {pipeline_mode = #tpu.pipeline_mode<synchronous>, transform_indices = @transform_4, window_bounds = array<i64: 32, 1>}, {pipeline_mode = #tpu.pipeline_mode<synchronous>, transform_indices = @transform_5, window_bounds = array<i64: 32, 32>}, {pipeline_mode = #tpu.pipeline_mode<synchronous>, transform_indices = @transform_6, window_bounds = array<i64: 32, 1>}, {pipeline_mode = #tpu.pipeline_mode<synchronous>, transform_indices = @transform_7, window_bounds = array<i64: 32, 1>}, {pipeline_mode = #tpu.pipeline_mode<synchronous>, transform_indices = @transform_8, window_bounds = array<i64: 1, 1>}, {transform_indices = @transform_9, window_bounds = array<i64: 1, 128>}]} {
    %c0 = arith.constant 0 : index
    %c0_0 = arith.constant 0 : index
    %0 = vector.load %arg1[%c0, %c0_0] : memref<8x128xf32, #tpu.memory_space<vmem>>, vector<8x128xf32>
    %c0_1 = arith.constant 0 : index
    %c0_2 = arith.constant 0 : index
    %1 = vector.load %arg2[%c0_1, %c0_2] : memref<32x8xf32, #tpu.memory_space<vmem>>, vector<32x8xf32>
    %cst = arith.constant dense<0.000000e+00> : vector<32x128xf32>
    %2 = tpu.matmul %1, %0, %cst {dimension_numbers = #tpu.dot_dimension_numbers<[1], [0], [0], [1], [0, 0, 1, 1], [], []>} : vector<32x8xf32>, vector<8x128xf32>, vector<32x128xf32> -> vector<32x128xf32>
    %c0_3 = arith.constant 0 : index
    %c0_4 = arith.constant 0 : index
    %3 = vector.load %arg3[%c0_3, %c0_4] : memref<32x1xf32, #tpu.memory_space<vmem>>, vector<32x1xf32>
    %4 = vector.broadcast %3 : vector<32x1xf32> to vector<32x128xf32>
    %5 = arith.addf %2, %4 : vector<32x128xf32>
    %6 = math.absf %5 : vector<32x128xf32>
    %cst_5 = arith.constant 0.000000e+00 : f32
    %7 = vector.broadcast %cst_5 : f32 to vector<32x128xf32>
    %8 = arith.subf %7, %6 : vector<32x128xf32>
    %9 = math.exp %8 : vector<32x128xf32>
    %10 = math.log1p %9 : vector<32x128xf32>
    %cst_6 = arith.constant 0.000000e+00 : f32
    %11 = vector.broadcast %cst_6 : f32 to vector<32x128xf32>
    %12 = arith.maximumf %5, %11 : vector<32x128xf32>
    %13 = arith.addf %12, %10 : vector<32x128xf32>
    %c0_7 = arith.constant 0 : index
    %c0_8 = arith.constant 0 : index
    %14 = vector.load %arg4[%c0_7, %c0_8] : memref<32x32xf32, #tpu.memory_space<vmem>>, vector<32x32xf32>
    %cst_9 = arith.constant dense<0.000000e+00> : vector<32x128xf32>
    %15 = tpu.matmul %14, %13, %cst_9 {dimension_numbers = #tpu.dot_dimension_numbers<[1], [0], [0], [1], [0, 0, 1, 1], [], []>} : vector<32x32xf32>, vector<32x128xf32>, vector<32x128xf32> -> vector<32x128xf32>
    %c0_10 = arith.constant 0 : index
    %c0_11 = arith.constant 0 : index
    %16 = vector.load %arg5[%c0_10, %c0_11] : memref<32x1xf32, #tpu.memory_space<vmem>>, vector<32x1xf32>
    %17 = vector.broadcast %16 : vector<32x1xf32> to vector<32x128xf32>
    %18 = arith.addf %15, %17 : vector<32x128xf32>
    %19 = math.absf %18 : vector<32x128xf32>
    %cst_12 = arith.constant 0.000000e+00 : f32
    %20 = vector.broadcast %cst_12 : f32 to vector<32x128xf32>
    %21 = arith.subf %20, %19 : vector<32x128xf32>
    %22 = math.exp %21 : vector<32x128xf32>
    %23 = math.log1p %22 : vector<32x128xf32>
    %cst_13 = arith.constant 0.000000e+00 : f32
    %24 = vector.broadcast %cst_13 : f32 to vector<32x128xf32>
    %25 = arith.maximumf %18, %24 : vector<32x128xf32>
    %26 = arith.addf %25, %23 : vector<32x128xf32>
    %c0_14 = arith.constant 0 : index
    %c0_15 = arith.constant 0 : index
    %27 = vector.load %arg6[%c0_14, %c0_15] : memref<32x32xf32, #tpu.memory_space<vmem>>, vector<32x32xf32>
    %cst_16 = arith.constant dense<0.000000e+00> : vector<32x128xf32>
    %28 = tpu.matmul %27, %26, %cst_16 {dimension_numbers = #tpu.dot_dimension_numbers<[1], [0], [0], [1], [0, 0, 1, 1], [], []>} : vector<32x32xf32>, vector<32x128xf32>, vector<32x128xf32> -> vector<32x128xf32>
    %c0_17 = arith.constant 0 : index
    %c0_18 = arith.constant 0 : index
    %29 = vector.load %arg7[%c0_17, %c0_18] : memref<32x1xf32, #tpu.memory_space<vmem>>, vector<32x1xf32>
    %30 = vector.broadcast %29 : vector<32x1xf32> to vector<32x128xf32>
    %31 = arith.addf %28, %30 : vector<32x128xf32>
    %32 = math.absf %31 : vector<32x128xf32>
    %cst_19 = arith.constant 0.000000e+00 : f32
    %33 = vector.broadcast %cst_19 : f32 to vector<32x128xf32>
    %34 = arith.subf %33, %32 : vector<32x128xf32>
    %35 = math.exp %34 : vector<32x128xf32>
    %36 = math.log1p %35 : vector<32x128xf32>
    %cst_20 = arith.constant 0.000000e+00 : f32
    %37 = vector.broadcast %cst_20 : f32 to vector<32x128xf32>
    %38 = arith.maximumf %31, %37 : vector<32x128xf32>
    %39 = arith.addf %38, %36 : vector<32x128xf32>
    %c0_21 = arith.constant 0 : index
    %c0_22 = arith.constant 0 : index
    %40 = vector.load %arg8[%c0_21, %c0_22] : memref<32x1xf32, #tpu.memory_space<vmem>>, vector<32x1xf32>
    %41 = vector.broadcast %40 : vector<32x1xf32> to vector<32x128xf32>
    %42 = arith.mulf %39, %41 : vector<32x128xf32>
    %cst_23 = arith.constant dense<0.000000e+00> : vector<128xf32>
    %43 = vector.multi_reduction <add>, %42, %cst_23 [0] : vector<32x128xf32> to vector<128xf32>
    %44 = vector.shape_cast %43 : vector<128xf32> to vector<1x128xf32>
    %c0_24 = arith.constant 0 : index
    %c0_25 = arith.constant 0 : index
    %45 = vector.load %arg9[%c0_24, %c0_25] : memref<1x1xf32, #tpu.memory_space<vmem>>, vector<1x1xf32>
    %46 = vector.broadcast %45 : vector<1x1xf32> to vector<1x128xf32>
    %47 = arith.addf %44, %46 : vector<1x128xf32>
    %cst_26 = arith.constant 0.000000e+00 : f32
    %48 = vector.broadcast %cst_26 : f32 to vector<1x128xf32>
    %49 = arith.subf %48, %47 : vector<1x128xf32>
    %50 = math.exp %49 : vector<1x128xf32>
    %cst_27 = arith.constant 1.000000e+00 : f32
    %51 = vector.broadcast %cst_27 : f32 to vector<1x128xf32>
    %52 = arith.addf %51, %50 : vector<1x128xf32>
    %53 = tpu.reciprocal %52 {approx = true} : vector<1x128xf32> -> vector<1x128xf32>
    %c0_28 = arith.constant 0 : index
    %c0_29 = arith.constant 0 : index
    %54 = vector.load %arg10[%c0_28, %c0_29] : memref<1x128xf32, #tpu.memory_space<vmem>>, vector<1x128xf32>
    tpu.vector_store %arg10[%c0_28, %c0_29], %53 {strides = array<i32>} : memref<1x128xf32, #tpu.memory_space<vmem>>, vector<1x128xf32>,
    return
  }
  func.func @transform_0(%arg0: i32) -> (i32, i32) {
    %c0_i32 = arith.constant 0 : i32
    %c0_i32_0 = arith.constant 0 : i32
    return %c0_i32, %arg0 : i32, i32
  }
  func.func @transform_1(%arg0: i32) -> (i32, i32) {
    %c0_i32 = arith.constant 0 : i32
    %c0_i32_0 = arith.constant 0 : i32
    %c0_i32_1 = arith.constant 0 : i32
    return %c0_i32, %c0_i32_0 : i32, i32
  }
  func.func @transform_2(%arg0: i32) -> (i32, i32) {
    %c0_i32 = arith.constant 0 : i32
    %c0_i32_0 = arith.constant 0 : i32
    %c0_i32_1 = arith.constant 0 : i32
    return %c0_i32, %c0_i32_0 : i32, i32
  }
  func.func @transform_3(%arg0: i32) -> (i32, i32) {
    %c0_i32 = arith.constant 0 : i32
    %c0_i32_0 = arith.constant 0 : i32
    %c0_i32_1 = arith.constant 0 : i32
    return %c0_i32, %c0_i32_0 : i32, i32
  }
  func.func @transform_4(%arg0: i32) -> (i32, i32) {
    %c0_i32 = arith.constant 0 : i32
    %c0_i32_0 = arith.constant 0 : i32
    %c0_i32_1 = arith.constant 0 : i32
    return %c0_i32, %c0_i32_0 : i32, i32
  }
  func.func @transform_5(%arg0: i32) -> (i32, i32) {
    %c0_i32 = arith.constant 0 : i32
    %c0_i32_0 = arith.constant 0 : i32
    %c0_i32_1 = arith.constant 0 : i32
    return %c0_i32, %c0_i32_0 : i32, i32
  }
  func.func @transform_6(%arg0: i32) -> (i32, i32) {
    %c0_i32 = arith.constant 0 : i32
    %c0_i32_0 = arith.constant 0 : i32
    %c0_i32_1 = arith.constant 0 : i32
    return %c0_i32, %c0_i32_0 : i32, i32
  }
  func.func @transform_7(%arg0: i32) -> (i32, i32) {
    %c0_i32 = arith.constant 0 : i32
    %c0_i32_0 = arith.constant 0 : i32
    %c0_i32_1 = arith.constant 0 : i32
    return %c0_i32, %c0_i32_0 : i32, i32
  }
  func.func @transform_8(%arg0: i32) -> (i32, i32) {
    %c0_i32 = arith.constant 0 : i32
    %c0_i32_0 = arith.constant 0 : i32
    %c0_i32_1 = arith.constant 0 : i32
    return %c0_i32, %c0_i32_0 : i32, i32
  }
  func.func @transform_9(%arg0: i32) -> (i32, i32) {
    %c0_i32 = arith.constant 0 : i32
    %c0_i32_0 = arith.constant 0 : i32
    return %c0_i32, %arg0 : i32, i32
  }
}

</mosaic_0001>

<llo_original>
// kernel: _barrier_nn_impl.1
$region0: #{_barrier_nn_impl.1}
  #allocation0 [shape = 'u32[]', space=smem, size = 0x4, offset = 0x4, fixed_abs, tag = 'smem constant byte address 0x4 - core index']
  #allocation1 [shape = 'u32[144,128]{1,0:T(1,128)}', space=vmem, size = 0x12000, scoped, tag = 'internal scratch']
  #allocation2 [shape = 'f32[1,1]{1,0:T(1,128)S(1)}', space=vmem, size = 0x200, scoped, tag = 'scoped memory for _barrier_nn_impl.1']
  %s0 = inlined_call_operand.vmem [shape: f32[8,8], index: 0, kind: input, shape index: {}]
  %s1 = inlined_call_operand.vmem [shape: f32[32,8], index: 1, kind: input, shape index: {}]
  %s2 = inlined_call_operand.vmem [shape: f32[32,1], index: 2, kind: input, shape index: {}]
  %s3 = inlined_call_operand.vmem [shape: f32[32,32], index: 3, kind: input, shape index: {}]
  %s4 = inlined_call_operand.vmem [shape: f32[32,1], index: 4, kind: input, shape index: {}]
  %s5 = inlined_call_operand.vmem [shape: f32[32,32], index: 5, kind: input, shape index: {}]
  %s6 = inlined_call_operand.vmem [shape: f32[32,1], index: 6, kind: input, shape index: {}]
  %s7 = inlined_call_operand.vmem [shape: f32[32,1], index: 7, kind: input, shape index: {}]
  %s8 = inlined_call_operand.<no memory space> [shape: f32[1,1], index: 8, kind: input, shape index: {}]
  %s9 = inlined_call_operand.hbm [shape: f32[1,8], index: 9, kind: output, shape index: {}]
  %s10 = sld [smem:[#allocation0]]
  $region46: #{_barrier_nn_impl.1} parent=0
    _
  %s12 = ssub.s32 1, %s10
  %s13 = scalar_select 0, %s12, %s10
  %v14 = vstv %s8
  %15 = vst [vmem:[#allocation2] sm:$0x1] %v14
  $region1: #{_barrier_nn_impl.1} parent=0
    #allocation3 [shape = 'u8[512]{0}', space=vmem, size = 0x400, scoped, tag = 'output window, operand 0, single buffered']
    #allocation4 [shape = 's32[1]{0}', space=sflag, size = 0x4, scoped, tag = 'scoped memory for _barrier_nn_impl.1']
    %16 = vsyncpa [#allocation4], 0
    // Predicated region
    $region2: #{_barrier_nn_impl.1} parent=1 // pred_check
      _
    $region3: #{_barrier_nn_impl.1} parent=1 // pred_check_branch
      %18 = sbr.rel (0) target = $region5
    $region4: #{_barrier_nn_impl.1} parent=1 // pred_region
      _
    $region5: #{_barrier_nn_impl.1} parent=1 // pred_fallthru
      _
    // Predicated region
    $region6: #{_barrier_nn_impl.1} parent=1 // pred_check
      _
    $region7: #{_barrier_nn_impl.1} parent=1 // pred_check_branch
      %20 = sbr.rel (0) target = $region9
    $region8: #{_barrier_nn_impl.1} parent=1 // pred_region
      _
    $region9: #{_barrier_nn_impl.1} parent=1 // pred_fallthru
      _
    // Predicated region
    $region10: #{_barrier_nn_impl.1} parent=1 // pred_check
      _
    $region11: #{_barrier_nn_impl.1} parent=1 // pred_check_branch
      %22 = sbr.rel (0) target = $region13
    $region12: #{_barrier_nn_impl.1} parent=1 // pred_region
      _
    $region13: #{_barrier_nn_impl.1} parent=1 // pred_fallthru
      _
    // Predicated region
    $region14: #{_barrier_nn_impl.1} parent=1 // pred_check
      _
    $region15: #{_barrier_nn_impl.1} parent=1 // pred_check_branch
      %24 = sbr.rel (0) target = $region17
    $region16: #{_barrier_nn_impl.1} parent=1 // pred_region
      _
    $region17: #{_barrier_nn_impl.1} parent=1 // pred_fallthru
      _
    // Predicated region
    $region18: #{_barrier_nn_impl.1} parent=1 // pred_check
      _
    $region19: #{_barrier_nn_impl.1} parent=1 // pred_check_branch
      %26 = sbr.rel (0) target = $region21
    $region20: #{_barrier_nn_impl.1} parent=1 // pred_region
      _
    $region21: #{_barrier_nn_impl.1} parent=1 // pred_fallthru
      _
    // Predicated region
    $region22: #{_barrier_nn_impl.1} parent=1 // pred_check
      _
    $region23: #{_barrier_nn_impl.1} parent=1 // pred_check_branch
      %28 = sbr.rel (0) target = $region25
    $region24: #{_barrier_nn_impl.1} parent=1 // pred_region
      _
    $region25: #{_barrier_nn_impl.1} parent=1 // pred_fallthru
      _
    // Predicated region
    $region26: #{_barrier_nn_impl.1} parent=1 // pred_check
      _
    $region27: #{_barrier_nn_impl.1} parent=1 // pred_check_branch
      %30 = sbr.rel (0) target = $region29
    $region28: #{_barrier_nn_impl.1} parent=1 // pred_region
      _
    $region29: #{_barrier_nn_impl.1} parent=1 // pred_fallthru
      _
    // Predicated region
    $region30: #{_barrier_nn_impl.1} parent=1 // pred_check
      _
    $region31: #{_barrier_nn_impl.1} parent=1 // pred_check_branch
      %32 = sbr.rel (0) target = $region33
    $region32: #{_barrier_nn_impl.1} parent=1 // pred_region
      _
    $region33: #{_barrier_nn_impl.1} parent=1 // pred_fallthru
      _
    // Predicated region
    $region34: #{_barrier_nn_impl.1} parent=1 // pred_check
      _
    $region35: #{_barrier_nn_impl.1} parent=1 // pred_check_branch
      %34 = sbr.rel (0) target = $region37
    $region36: #{_barrier_nn_impl.1} parent=1 // pred_region
      _
    $region37: #{_barrier_nn_impl.1} parent=1 // pred_fallthru
      _
    %v35 = vld [vmem:[%s0] sm:$0xff]
    %v36 = vld [vmem:[%s1] sm:$0xff]
    %v37 = vld [vmem:[%s1 + $0x8] sm:$0xff]
    %v38 = vld [vmem:[%s1 + $0x10] sm:$0xff]
    %v39 = vld [vmem:[%s1 + $0x18] sm:$0xff]
    %v40 = vld [vmem:[%s2] sm:$0xff]
    %v41 = vld [vmem:[%s2 + $0x8] sm:$0xff]
    %v42 = vld [vmem:[%s2 + $0x10] sm:$0xff]
    %v43 = vld [vmem:[%s2 + $0x18] sm:$0xff]
    %45 = vset.pattern.permute.xlu0 0
    %46 = vperm.xlu0 %45, %v40
    %v47 = vpop.permute.xlu0 %46
    %50 = vset.pattern.permute.xlu0 0
    %51 = vperm.xlu0 %50, %v41
    %v52 = vpop.permute.xlu0 %51
    %55 = vset.pattern.permute.xlu0 0
    %56 = vperm.xlu0 %55, %v42
    %v57 = vpop.permute.xlu0 %56
    %60 = vset.pattern.permute.xlu0 0
    %61 = vperm.xlu0 %60, %v43
    %v62 = vpop.permute.xlu0 %61
    %vm64 = vcmask 64512
    %v66 = vsel %vm64, %v36, 0
    %v69 = vsel %vm64, %v37, 0
    %v72 = vsel %vm64, %v38, 0
    %v75 = vsel %vm64, %v39, 0
    %77 = vmatprep.subr.mxu0 0.0
    %78 = vmatpush1.msra.mxu0 %v35
    %79 = vmatprep.subr.mxu0 0.0
    %80 = vmatpush1.msra.mxu0 0.0
    %81 = vmatprep.subr.mxu0 0.0
    %82 = vmatpush1.msra.mxu0 0.0
    %83 = vmatprep.subr.mxu0 0.0
    %84 = vmatpush1.msra.mxu0 0.0
    %85 = vmatprep.subr.mxu0 0.0
    %86 = vmatpush1.msra.mxu0 0.0
    %87 = vmatprep.subr.mxu0 0.0
    %88 = vmatpush1.msra.mxu0 0.0
    %89 = vmatprep.subr.mxu0 0.0
    %90 = vmatpush1.msra.mxu0 0.0
    %91 = vmatprep.subr.mxu0 0.0
    %92 = vmatpush1.msra.mxu0 0.0
    %93 = vmatprep.subr.mxu0 0.0
    %94 = vmatpush1.msra.mxu0 0.0
    %95 = vmatprep.subr.mxu0 0.0
    %96 = vmatpush1.msra.mxu0 0.0
    %97 = vmatprep.subr.mxu0 0.0
    %98 = vmatpush1.msra.mxu0 0.0
    %99 = vmatprep.subr.mxu0 0.0
    %100 = vmatpush1.msra.mxu0 0.0
    %101 = vmatprep.subr.mxu0 0.0
    %102 = vmatpush1.msra.mxu0 0.0
    %103 = vmatprep.subr.mxu0 0.0
    %104 = vmatpush1.msra.mxu0 0.0
    %105 = vmatprep.subr.mxu0 0.0
    %106 = vmatpush1.msra.mxu0 0.0
    %107 = vmatprep.subr.mxu0 0.0
    %108 = vmatpush1.msra.mxu0 0.0
    %109 = vmatprep.subr.mxu0 0.0
    %110 = vmatpush1.msra.mxu0 0.0
    %111 = vmatprep.subr.mxu0 0.0
    %112 = vmatpush1.msra.mxu0 0.0
    %113 = vmatprep.subr.mxu0 0.0
    %114 = vmatpush1.msra.mxu0 0.0
    %115 = vmatprep.subr.mxu0 0.0
    %116 = vmatpush1.msra.mxu0 0.0
    %117 = vmatprep.subr.mxu0 0.0
    %118 = vmatpush1.msra.mxu0 0.0
    %119 = vmatprep.subr.mxu0 0.0
    %120 = vmatpush1.msra.mxu0 0.0
    %121 = vmatprep.subr.mxu0 0.0
    %122 = vmatpush1.msra.mxu0 0.0
    %123 = vmatprep.subr.mxu0 0.0
    %124 = vmatpush1.msra.mxu0 0.0
    %125 = vmatprep.subr.mxu0 0.0
    %126 = vmatpush1.msra.mxu0 0.0
    %127 = vmatprep.subr.mxu0 0.0
    %128 = vmatpush1.msra.mxu0 0.0
    %129 = vmatprep.subr.mxu0 0.0
    %130 = vmatpush1.msra.mxu0 0.0
    %131 = vmatprep.subr.mxu0 0.0
    %132 = vmatpush1.msra.mxu0 0.0
    %133 = vmatprep.subr.mxu0 0.0
    %134 = vmatpush1.msra.mxu0 0.0
    %135 = vmatprep.subr.mxu0 0.0
    %136 = vmatpush1.msra.mxu0 0.0
    %137 = vmatprep.subr.mxu0 0.0
    %138 = vmatpush1.msra.mxu0 0.0
    %139 = vmatprep.subr.mxu0 0.0
    %140 = vmatpush1.msra.mxu0 0.0
    %141 = vmatprep.mubr.f32.mxu0 0.0
    %142 = vmatmul.mubr.f32.gmra.mrb[0].mxu0 %v66
    %v143 = vpop.f32.mrb[0].mxu0
    %v144 = vadd.f32 %v47, %v143
    %v145 = vpop.f32.mrb[0].mxu0
    %146 = vmatprep.mubr.f32.mxu0 0.0
    %147 = vmatmul.mubr.f32.gmra.mrb[0].mxu0 %v69
    %v148 = vpop.f32.mrb[0].mxu0
    %v149 = vadd.f32 %v52, %v148
    %v150 = vpop.f32.mrb[0].mxu0
    %151 = vmatprep.mubr.f32.mxu0 0.0
    %152 = vmatmul.mubr.f32.gmra.mrb[0].mxu0 %v72
    %v153 = vpop.f32.mrb[0].mxu0
    %v154 = vadd.f32 %v57, %v153
    %v155 = vpop.f32.mrb[0].mxu0
    %156 = vmatprep.mubr.f32.mxu0 0.0
    %157 = vmatmul.mubr.f32.gmra.mrb[0].mxu0 %v75
    %v158 = vpop.f32.mrb[0].mxu0
    %v159 = vadd.f32 %v62, %v158
    %v160 = vpop.f32.mrb[0].mxu0
    %161 = vdwg.mxu0
    %v162 = vand.u32 2147483647, %v144
    %v163 = vand.u32 2147483647, %v149
    %v164 = vand.u32 2147483647, %v154
    %v165 = vand.u32 2147483647, %v159
    %v166 = vsub.f32 0.0, %v162
    %v167 = vsub.f32 0.0, %v163
    %v168 = vsub.f32 0.0, %v164
    %v169 = vsub.f32 0.0, %v165
    %v170 = vmul.f32 %v166, 1.442695
    %v171 = vpow.pop %v170
    %v172 = vmul.f32 %v167, 1.442695
    %v173 = vpow.pop %v172
    %v174 = vmul.f32 %v168, 1.442695
    %v175 = vpow.pop %v174
    %v176 = vmul.f32 %v169, 1.442695
    %v177 = vpow.pop %v176
    %v178 = vadd.f32 %v171, 1.0
    %v179 = vlog2.pop %v178
    %v180 = vmul.f32 %v179, 0.6931472
    %v181 = vmul.f32 -0.5, %v171
    %v182 = vadd.f32 %v181, 1.0
    %v183 = vmul.f32 %v182, %v171
    %v184 = vand.u32 2147483647, %v171
    %vm185 = vcmp.lt.f32.partialorder %v184, 0.0004427343
    %v186 = vsel %vm185, %v183, %v180
    %v187 = vadd.f32 %v173, 1.0
    %v188 = vlog2.pop %v187
    %v189 = vmul.f32 %v188, 0.6931472
    %v190 = vmul.f32 -0.5, %v173
    %v191 = vadd.f32 %v190, 1.0
    %v192 = vmul.f32 %v191, %v173
    %v193 = vand.u32 2147483647, %v173
    %vm194 = vcmp.lt.f32.partialorder %v193, 0.0004427343
    %v195 = vsel %vm194, %v192, %v189
    %v196 = vadd.f32 %v175, 1.0
    %v197 = vlog2.pop %v196
    %v198 = vmul.f32 %v197, 0.6931472
    %v199 = vmul.f32 -0.5, %v175
    %v200 = vadd.f32 %v199, 1.0
    %v201 = vmul.f32 %v200, %v175
    %v202 = vand.u32 2147483647, %v175
    %vm203 = vcmp.lt.f32.partialorder %v202, 0.0004427343
    %v204 = vsel %vm203, %v201, %v198
    %v205 = vadd.f32 %v177, 1.0
    %v206 = vlog2.pop %v205
    %v207 = vmul.f32 %v206, 0.6931472
    %v208 = vmul.f32 -0.5, %v177
    %v209 = vadd.f32 %v208, 1.0
    %v210 = vmul.f32 %v209, %v177
    %v211 = vand.u32 2147483647, %v177
    %vm212 = vcmp.lt.f32.partialorder %v211, 0.0004427343
    %v213 = vsel %vm212, %v210, %v207
    %v214 = vmax.f32 %v144, 0.0
    %v215 = vmax.f32 %v149, 0.0
    %v216 = vmax.f32 %v154, 0.0
    %v217 = vmax.f32 %v159, 0.0
    %v218 = vadd.f32 %v214, %v186
    %v219 = vadd.f32 %v215, %v195
    %v220 = vadd.f32 %v216, %v204
    %v221 = vadd.f32 %v217, %v213
    %v222 = vld [vmem:[%s3] sm:$0xff]
    %v223 = vld [vmem:[%s3 + $0x8] sm:$0xff]
    %v224 = vld [vmem:[%s3 + $0x10] sm:$0xff]
    %v225 = vld [vmem:[%s3 + $0x18] sm:$0xff]
    %v226 = vld [vmem:[%s4] sm:$0xff]
    %v227 = vld [vmem:[%s4 + $0x8] sm:$0xff]
    %v228 = vld [vmem:[%s4 + $0x10] sm:$0xff]
    %v229 = vld [vmem:[%s4 + $0x18] sm:$0xff]
    %231 = vset.pattern.permute.xlu0 0
    %232 = vperm.xlu0 %231, %v226
    %v233 = vpop.permute.xlu0 %232
    %236 = vset.pattern.permute.xlu0 0
    %237 = vperm.xlu0 %236, %v227
    %v238 = vpop.permute.xlu0 %237
    %241 = vset.pattern.permute.xlu0 0
    %242 = vperm.xlu0 %241, %v228
    %v243 = vpop.permute.xlu0 %242
    %246 = vset.pattern.permute.xlu0 0
    %247 = vperm.xlu0 %246, %v229
    %v248 = vpop.permute.xlu0 %247
    %vm250 = vcmask 261120
    %v252 = vsel %vm250, %v222, 0
    %v255 = vsel %vm250, %v223, 0
    %v258 = vsel %vm250, %v224, 0
    %v261 = vsel %vm250, %v225, 0
    %263 = vmatprep.subr.mxu0 0.0
    %264 = vmatpush1.msra.mxu0 %v218
    %265 = vmatprep.subr.mxu0 0.0
    %266 = vmatpush1.msra.mxu0 %v219
    %267 = vmatprep.subr.mxu0 0.0
    %268 = vmatpush1.msra.mxu0 %v220
    %269 = vmatprep.subr.mxu0 0.0
    %270 = vmatpush1.msra.mxu0 %v221
    %271 = vmatprep.subr.mxu0 0.0
    %272 = vmatpush1.msra.mxu0 0.0
    %273 = vmatprep.subr.mxu0 0.0
    %274 = vmatpush1.msra.mxu0 0.0
    %275 = vmatprep.subr.mxu0 0.0
    %276 = vmatpush1.msra.mxu0 0.0
    %277 = vmatprep.subr.mxu0 0.0
    %278 = vmatpush1.msra.mxu0 0.0
    %279 = vmatprep.subr.mxu0 0.0
    %280 = vmatpush1.msra.mxu0 0.0
    %281 = vmatprep.subr.mxu0 0.0
    %282 = vmatpush1.msra.mxu0 0.0
    %283 = vmatprep.subr.mxu0 0.0
    %284 = vmatpush1.msra.mxu0 0.0
    %285 = vmatprep.subr.mxu0 0.0
    %286 = vmatpush1.msra.mxu0 0.0
    %287 = vmatprep.subr.mxu0 0.0
    %288 = vmatpush1.msra.mxu0 0.0
    %289 = vmatprep.subr.mxu0 0.0
    %290 = vmatpush1.msra.mxu0 0.0
    %291 = vmatprep.subr.mxu0 0.0
    %292 = vmatpush1.msra.mxu0 0.0
    %293 = vmatprep.subr.mxu0 0.0
    %294 = vmatpush1.msra.mxu0 0.0
    %295 = vmatprep.subr.mxu0 0.0
    %296 = vmatpush1.msra.mxu0 0.0
    %297 = vmatprep.subr.mxu0 0.0
    %298 = vmatpush1.msra.mxu0 0.0
    %299 = vmatprep.subr.mxu0 0.0
    %300 = vmatpush1.msra.mxu0 0.0
    %301 = vmatprep.subr.mxu0 0.0
    %302 = vmatpush1.msra.mxu0 0.0
    %303 = vmatprep.subr.mxu0 0.0
    %304 = vmatpush1.msra.mxu0 0.0
    %305 = vmatprep.subr.mxu0 0.0
    %306 = vmatpush1.msra.mxu0 0.0
    %307 = vmatprep.subr.mxu0 0.0
    %308 = vmatpush1.msra.mxu0 0.0
    %309 = vmatprep.subr.mxu0 0.0
    %310 = vmatpush1.msra.mxu0 0.0
    %311 = vmatprep.subr.mxu0 0.0
    %312 = vmatpush1.msra.mxu0 0.0
    %313 = vmatprep.subr.mxu0 0.0
    %314 = vmatpush1.msra.mxu0 0.0
    %315 = vmatprep.subr.mxu0 0.0
    %316 = vmatpush1.msra.mxu0 0.0
    %317 = vmatprep.subr.mxu0 0.0
    %318 = vmatpush1.msra.mxu0 0.0
    %319 = vmatprep.subr.mxu0 0.0
    %320 = vmatpush1.msra.mxu0 0.0
    %321 = vmatprep.subr.mxu0 0.0
    %322 = vmatpush1.msra.mxu0 0.0
    %323 = vmatprep.subr.mxu0 0.0
    %324 = vmatpush1.msra.mxu0 0.0
    %325 = vmatprep.subr.mxu0 0.0
    %326 = vmatpush1.msra.mxu0 0.0
    %327 = vmatprep.mubr.f32.mxu0 0.0
    %328 = vmatmul.mubr.f32.gmra.mrb[0].mxu0 %v252
    %v329 = vpop.f32.mrb[0].mxu0
    %v330 = vadd.f32 %v233, %v329
    %v331 = vpop.f32.mrb[0].mxu0
    %332 = vmatprep.mubr.f32.mxu0 0.0
    %333 = vmatmul.mubr.f32.gmra.mrb[0].mxu0 %v255
    %v334 = vpop.f32.mrb[0].mxu0
    %v335 = vadd.f32 %v238, %v334
    %v336 = vpop.f32.mrb[0].mxu0
    %337 = vmatprep.mubr.f32.mxu0 0.0
    %338 = vmatmul.mubr.f32.gmra.mrb[0].mxu0 %v258
    %v339 = vpop.f32.mrb[0].mxu0
    %v340 = vadd.f32 %v243, %v339
    %v341 = vpop.f32.mrb[0].mxu0
    %342 = vmatprep.mubr.f32.mxu0 0.0
    %343 = vmatmul.mubr.f32.gmra.mrb[0].mxu0 %v261
    %v344 = vpop.f32.mrb[0].mxu0
    %v345 = vadd.f32 %v248, %v344
    %v346 = vpop.f32.mrb[0].mxu0
    %347 = vdwg.mxu0
    %v348 = vand.u32 2147483647, %v330
    %v349 = vand.u32 2147483647, %v335
    %v350 = vand.u32 2147483647, %v340
    %v351 = vand.u32 2147483647, %v345
    %v352 = vsub.f32 0.0, %v348
    %v353 = vsub.f32 0.0, %v349
    %v354 = vsub.f32 0.0, %v350
    %v355 = vsub.f32 0.0, %v351
    %v356 = vmul.f32 %v352, 1.442695
    %v357 = vpow.pop %v356
    %v358 = vmul.f32 %v353, 1.442695
    %v359 = vpow.pop %v358
    %v360 = vmul.f32 %v354, 1.442695
    %v361 = vpow.pop %v360
    %v362 = vmul.f32 %v355, 1.442695
    %v363 = vpow.pop %v362
    %v364 = vadd.f32 %v357, 1.0
    %v365 = vlog2.pop %v364
    %v366 = vmul.f32 %v365, 0.6931472
    %v367 = vmul.f32 -0.5, %v357
    %v368 = vadd.f32 %v367, 1.0
    %v369 = vmul.f32 %v368, %v357
    %v370 = vand.u32 2147483647, %v357
    %vm371 = vcmp.lt.f32.partialorder %v370, 0.0004427343
    %v372 = vsel %vm371, %v369, %v366
    %v373 = vadd.f32 %v359, 1.0
    %v374 = vlog2.pop %v373
    %v375 = vmul.f32 %v374, 0.6931472
    %v376 = vmul.f32 -0.5, %v359
    %v377 = vadd.f32 %v376, 1.0
    %v378 = vmul.f32 %v377, %v359
    %v379 = vand.u32 2147483647, %v359
    %vm380 = vcmp.lt.f32.partialorder %v379, 0.0004427343
    %v381 = vsel %vm380, %v378, %v375
    %v382 = vadd.f32 %v361, 1.0
    %v383 = vlog2.pop %v382
    %v384 = vmul.f32 %v383, 0.6931472
    %v385 = vmul.f32 -0.5, %v361
    %v386 = vadd.f32 %v385, 1.0
    %v387 = vmul.f32 %v386, %v361
    %v388 = vand.u32 2147483647, %v361
    %vm389 = vcmp.lt.f32.partialorder %v388, 0.0004427343
    %v390 = vsel %vm389, %v387, %v384
    %v391 = vadd.f32 %v363, 1.0
    %v392 = vlog2.pop %v391
    %v393 = vmul.f32 %v392, 0.6931472
    %v394 = vmul.f32 -0.5, %v363
    %v395 = vadd.f32 %v394, 1.0
    %v396 = vmul.f32 %v395, %v363
    %v397 = vand.u32 2147483647, %v363
    %vm398 = vcmp.lt.f32.partialorder %v397, 0.0004427343
    %v399 = vsel %vm398, %v396, %v393
    %v400 = vmax.f32 %v330, 0.0
    %v401 = vmax.f32 %v335, 0.0
    %v402 = vmax.f32 %v340, 0.0
    %v403 = vmax.f32 %v345, 0.0
    %v404 = vadd.f32 %v400, %v372
    %v405 = vadd.f32 %v401, %v381
    %v406 = vadd.f32 %v402, %v390
    %v407 = vadd.f32 %v403, %v399
    %v408 = vld [vmem:[%s5] sm:$0xff]
    %v409 = vld [vmem:[%s5 + $0x8] sm:$0xff]
    %v410 = vld [vmem:[%s5 + $0x10] sm:$0xff]
    %v411 = vld [vmem:[%s5 + $0x18] sm:$0xff]
    %v412 = vld [vmem:[%s6] sm:$0xff]
    %v413 = vld [vmem:[%s6 + $0x8] sm:$0xff]
    %v414 = vld [vmem:[%s6 + $0x10] sm:$0xff]
    %v415 = vld [vmem:[%s6 + $0x18] sm:$0xff]
    %417 = vset.pattern.permute.xlu0 0
    %418 = vperm.xlu0 %417, %v412
    %v419 = vpop.permute.xlu0 %418
    %422 = vset.pattern.permute.xlu0 0
    %423 = vperm.xlu0 %422, %v413
    %v424 = vpop.permute.xlu0 %423
    %427 = vset.pattern.permute.xlu0 0
    %428 = vperm.xlu0 %427, %v414
    %v429 = vpop.permute.xlu0 %428
    %432 = vset.pattern.permute.xlu0 0
    %433 = vperm.xlu0 %432, %v415
    %v434 = vpop.permute.xlu0 %433
    %v437 = vsel %vm250, %v408, 0
    %v440 = vsel %vm250, %v409, 0
    %v443 = vsel %vm250, %v410, 0
    %v446 = vsel %vm250, %v411, 0
    %448 = vmatprep.subr.mxu0 0.0
    %449 = vmatpush1.msra.mxu0 %v404
    %450 = vmatprep.subr.mxu0 0.0
    %451 = vmatpush1.msra.mxu0 %v405
    %452 = vmatprep.subr.mxu0 0.0
    %453 = vmatpush1.msra.mxu0 %v406
    %454 = vmatprep.subr.mxu0 0.0
    %455 = vmatpush1.msra.mxu0 %v407
    %456 = vmatprep.subr.mxu0 0.0
    %457 = vmatpush1.msra.mxu0 0.0
    %458 = vmatprep.subr.mxu0 0.0
    %459 = vmatpush1.msra.mxu0 0.0
    %460 = vmatprep.subr.mxu0 0.0
    %461 = vmatpush1.msra.mxu0 0.0
    %462 = vmatprep.subr.mxu0 0.0
    %463 = vmatpush1.msra.mxu0 0.0
    %464 = vmatprep.subr.mxu0 0.0
    %465 = vmatpush1.msra.mxu0 0.0
    %466 = vmatprep.subr.mxu0 0.0
    %467 = vmatpush1.msra.mxu0 0.0
    %468 = vmatprep.subr.mxu0 0.0
    %469 = vmatpush1.msra.mxu0 0.0
    %470 = vmatprep.subr.mxu0 0.0
    %471 = vmatpush1.msra.mxu0 0.0
    %472 = vmatprep.subr.mxu0 0.0
    %473 = vmatpush1.msra.mxu0 0.0
    %474 = vmatprep.subr.mxu0 0.0
    %475 = vmatpush1.msra.mxu0 0.0
    %476 = vmatprep.subr.mxu0 0.0
    %477 = vmatpush1.msra.mxu0 0.0
    %478 = vmatprep.subr.mxu0 0.0
    %479 = vmatpush1.msra.mxu0 0.0
    %480 = vmatprep.subr.mxu0 0.0
    %481 = vmatpush1.msra.mxu0 0.0
    %482 = vmatprep.subr.mxu0 0.0
    %483 = vmatpush1.msra.mxu0 0.0
    %484 = vmatprep.subr.mxu0 0.0
    %485 = vmatpush1.msra.mxu0 0.0
    %486 = vmatprep.subr.mxu0 0.0
    %487 = vmatpush1.msra.mxu0 0.0
    %488 = vmatprep.subr.mxu0 0.0
    %489 = vmatpush1.msra.mxu0 0.0
    %490 = vmatprep.subr.mxu0 0.0
    %491 = vmatpush1.msra.mxu0 0.0
    %492 = vmatprep.subr.mxu0 0.0
    %493 = vmatpush1.msra.mxu0 0.0
    %494 = vmatprep.subr.mxu0 0.0
    %495 = vmatpush1.msra.mxu0 0.0
    %496 = vmatprep.subr.mxu0 0.0
    %497 = vmatpush1.msra.mxu0 0.0
    %498 = vmatprep.subr.mxu0 0.0
    %499 = vmatpush1.msra.mxu0 0.0
    %500 = vmatprep.subr.mxu0 0.0
    %501 = vmatpush1.msra.mxu0 0.0
    %502 = vmatprep.subr.mxu0 0.0
    %503 = vmatpush1.msra.mxu0 0.0
    %504 = vmatprep.subr.mxu0 0.0
    %505 = vmatpush1.msra.mxu0 0.0
    %506 = vmatprep.subr.mxu0 0.0
    %507 = vmatpush1.msra.mxu0 0.0
    %508 = vmatprep.subr.mxu0 0.0
    %509 = vmatpush1.msra.mxu0 0.0
    %510 = vmatprep.subr.mxu0 0.0
    %511 = vmatpush1.msra.mxu0 0.0
    %512 = vmatprep.mubr.f32.mxu0 0.0
    %513 = vmatmul.mubr.f32.gmra.mrb[0].mxu0 %v437
    %v514 = vpop.f32.mrb[0].mxu0
    %v515 = vadd.f32 %v419, %v514
    %v516 = vpop.f32.mrb[0].mxu0
    %517 = vmatprep.mubr.f32.mxu0 0.0
    %518 = vmatmul.mubr.f32.gmra.mrb[0].mxu0 %v440
    %v519 = vpop.f32.mrb[0].mxu0
    %v520 = vadd.f32 %v424, %v519
    %v521 = vpop.f32.mrb[0].mxu0
    %522 = vmatprep.mubr.f32.mxu0 0.0
    %523 = vmatmul.mubr.f32.gmra.mrb[0].mxu0 %v443
    %v524 = vpop.f32.mrb[0].mxu0
    %v525 = vadd.f32 %v429, %v524
    %v526 = vpop.f32.mrb[0].mxu0
    %527 = vmatprep.mubr.f32.mxu0 0.0
    %528 = vmatmul.mubr.f32.gmra.mrb[0].mxu0 %v446
    %v529 = vpop.f32.mrb[0].mxu0
    %v530 = vadd.f32 %v434, %v529
    %v531 = vpop.f32.mrb[0].mxu0
    %532 = vdwg.mxu0
    %v533 = vand.u32 2147483647, %v515
    %v534 = vand.u32 2147483647, %v520
    %v535 = vand.u32 2147483647, %v525
    %v536 = vand.u32 2147483647, %v530
    %v537 = vsub.f32 0.0, %v533
    %v538 = vsub.f32 0.0, %v534
    %v539 = vsub.f32 0.0, %v535
    %v540 = vsub.f32 0.0, %v536
    %v541 = vmul.f32 %v537, 1.442695
    %v542 = vpow.pop %v541
    %v543 = vmul.f32 %v538, 1.442695
    %v544 = vpow.pop %v543
    %v545 = vmul.f32 %v539, 1.442695
    %v546 = vpow.pop %v545
    %v547 = vmul.f32 %v540, 1.442695
    %v548 = vpow.pop %v547
    %v549 = vadd.f32 %v542, 1.0
    %v550 = vlog2.pop %v549
    %v551 = vmul.f32 %v550, 0.6931472
    %v552 = vmul.f32 -0.5, %v542
    %v553 = vadd.f32 %v552, 1.0
    %v554 = vmul.f32 %v553, %v542
    %v555 = vand.u32 2147483647, %v542
    %vm556 = vcmp.lt.f32.partialorder %v555, 0.0004427343
    %v557 = vsel %vm556, %v554, %v551
    %v558 = vadd.f32 %v544, 1.0
    %v559 = vlog2.pop %v558
    %v560 = vmul.f32 %v559, 0.6931472
    %v561 = vmul.f32 -0.5, %v544
    %v562 = vadd.f32 %v561, 1.0
    %v563 = vmul.f32 %v562, %v544
    %v564 = vand.u32 2147483647, %v544
    %vm565 = vcmp.lt.f32.partialorder %v564, 0.0004427343
    %v566 = vsel %vm565, %v563, %v560
    %v567 = vadd.f32 %v546, 1.0
    %v568 = vlog2.pop %v567
    %v569 = vmul.f32 %v568, 0.6931472
    %v570 = vmul.f32 -0.5, %v546
    %v571 = vadd.f32 %v570, 1.0
    %v572 = vmul.f32 %v571, %v546
    %v573 = vand.u32 2147483647, %v546
    %vm574 = vcmp.lt.f32.partialorder %v573, 0.0004427343
    %v575 = vsel %vm574, %v572, %v569
    %v576 = vadd.f32 %v548, 1.0
    %v577 = vlog2.pop %v576
    %v578 = vmul.f32 %v577, 0.6931472
    %v579 = vmul.f32 -0.5, %v548
    %v580 = vadd.f32 %v579, 1.0
    %v581 = vmul.f32 %v580, %v548
    %v582 = vand.u32 2147483647, %v548
    %vm583 = vcmp.lt.f32.partialorder %v582, 0.0004427343
    %v584 = vsel %vm583, %v581, %v578
    %v585 = vmax.f32 %v515, 0.0
    %v586 = vmax.f32 %v520, 0.0
    %v587 = vmax.f32 %v525, 0.0
    %v588 = vmax.f32 %v530, 0.0
    %v589 = vadd.f32 %v585, %v557
    %v590 = vadd.f32 %v586, %v566
    %v591 = vadd.f32 %v587, %v575
    %v592 = vadd.f32 %v588, %v584
    %v593 = vld [vmem:[%s7] sm:$0xff]
    %v594 = vld [vmem:[%s7 + $0x8] sm:$0xff]
    %v595 = vld [vmem:[%s7 + $0x10] sm:$0xff]
    %v596 = vld [vmem:[%s7 + $0x18] sm:$0xff]
    %598 = vset.pattern.permute.xlu0 0
    %599 = vperm.xlu0 %598, %v593
    %v600 = vpop.permute.xlu0 %599
    %603 = vset.pattern.permute.xlu0 0
    %604 = vperm.xlu0 %603, %v594
    %v605 = vpop.permute.xlu0 %604
    %608 = vset.pattern.permute.xlu0 0
    %609 = vperm.xlu0 %608, %v595
    %v610 = vpop.permute.xlu0 %609
    %613 = vset.pattern.permute.xlu0 0
    %614 = vperm.xlu0 %613, %v596
    %v615 = vpop.permute.xlu0 %614
    %v617 = vmul.f32 %v589, %v600
    %v618 = vmul.f32 %v590, %v605
    %v619 = vmul.f32 %v591, %v610
    %v620 = vmul.f32 %v592, %v615
    %v621 = vadd.f32 %v617, %v618
    %v622 = vadd.f32 %v621, %v619
    %v623 = vadd.f32 %v622, %v620
    %v624 = vrot.slane %v623, 4
    %v625 = vadd.f32 %v623, %v624
    %v626 = vrot.slane %v625, 2
    %v627 = vadd.f32 %v625, %v626
    %v628 = vrot.slane %v627, 1
    %v629 = vadd.f32 %v627, %v628
    %v630 = vld [vmem:[#allocation2] sm:$0x1]
    %632 = vset.pattern.permute.xlu0 0
    %633 = vperm.xlu0 %632, %v630
    %v634 = vpop.permute.xlu0 %633
    %v636 = vlaneseq
    %v637 = vshrl.u32 %v636, 7
    %v638 = vsub.s32 0, %v637
    %v639 = vrot.slane %v634, %v638
    %v640 = vadd.f32 %v629, %v639
    %v641 = vsub.f32 0.0, %v640
    %v642 = vmul.f32 %v641, 1.442695
    %v643 = vpow.pop %v642
    %v644 = vadd.f32 %v643, 1.0
    %v645 = vrcp.pop %v644
    %646 = vst [vmem:[#allocation3] sm:$0x1] %v645
    // Predicated region
    $region38: #{_barrier_nn_impl.1} parent=1 // pred_check
      _
    $region39: #{_barrier_nn_impl.1} parent=1 // pred_check_branch
      %648 = sbr.rel (0) target = $region41
    $region40: #{_barrier_nn_impl.1} parent=1 // pred_region
      %s650 = ssub.s32 16, 16
      %651 = vsyncadd [#allocation4], %s650
      %s653 = sshll.u32 [#allocation3], 4
      %s654 = int_to_ptr.vmem [resolvable:$true] %s653
      %656 = dma.vmem_to_hbm [thread:$0]  %s654, 16, %s9, [#allocation4]
    $region41: #{_barrier_nn_impl.1} parent=1 // pred_fallthru
      _
    // Predicated region
    $region42: #{_barrier_nn_impl.1} parent=1 // pred_check
      _
    $region43: #{_barrier_nn_impl.1} parent=1 // pred_check_branch
      %658 = sbr.rel (0) target = $region45
    $region44: #{_barrier_nn_impl.1} parent=1 // pred_region
      %659 = dma.done [#allocation4], 16
    $region45: #{_barrier_nn_impl.1} parent=1 // pred_fallthru
      _
    %660 = vsyncpa [#allocation4], 1

</llo_original>
